<compile_context>
chip_gen: v5e
topology: v5e:2x2
jax: 0.10.0
libtpu: 0.0.40
codegen_flags: <defaults>
</compile_context>

<pallas_src>
import jax
import jax.numpy as jnp
from jax.experimental import pallas as pl
from jax.experimental.pallas import tpu as pltpu


def _conv1x1_tile_kernel(x_ref, w_ref, b_ref, o_ref):
    # x_ref: (1, C_in, TS)   -- one batch element, one spatial tile
    # w_ref: (C_out, C_in)   -- full weight, VMEM-resident across the grid
    # b_ref: (C_out, 1)      -- bias column, broadcasts over the spatial lanes
    # o_ref: (1, C_out, TS)
    acc = jnp.dot(w_ref[...], x_ref[0], preferred_element_type=jnp.float32)
    o_ref[0] = (acc + b_ref[...]).astype(o_ref.dtype)


def _conv1x1_whole_kernel(x_ref, w_ref, b_ref, o_ref):
    # Whole problem resident in VMEM: x_ref (N, C_in, S), o_ref (N, C_out, S).
    for b in range(x_ref.shape[0]):  # static, small N
        acc = jnp.dot(w_ref[...], x_ref[b], preferred_element_type=jnp.float32)
        o_ref[b] = (acc + b_ref[...]).astype(o_ref.dtype)


def _round_up(v, m):
    return ((v + m - 1) // m) * m


def _vmem_capacity_bytes():
    try:
        return int(pltpu.get_tpu_info().vmem_capacity_bytes)
    except Exception:
        return 64 * 1024 * 1024  # conservative fallback = v7x per-TC VMEM


def fpn_block_conv1x1(x_nchw, weight, bias, *, max_tile_s=2048, use_single_block=None):
    """1x1 conv: x_nchw (N, C_in, H, W), weight (C_out, C_in, 1, 1), bias (C_out,)."""
    n, c_in, h, w = x_nchw.shape
    c_out = weight.shape[0]
    s = h * w

    # Free layout glue: trailing-dim reshapes only (no transpose, no HBM pass).
    x_3d = x_nchw.reshape(n, c_in, s)          # (N, C_in, S)
    w_mat = weight.reshape(c_out, c_in)        # (C_out, C_in)
    b_col = bias.reshape(c_out, 1)             # (C_out, 1)

    itemsize = x_3d.dtype.itemsize
    w_bytes = (c_out * c_in + c_out) * w_mat.dtype.itemsize

    # Per-generation VMEM sizing: explicit limit + tile budget with headroom.
    vmem_phys = _vmem_capacity_bytes()
    vmem_limit = min(int(vmem_phys * 0.8), 100 * 1024 * 1024)
    tile_budget = int(vmem_limit * 0.85)

    # ---- Small-problem fast path: everything fits in VMEM -> one invocation.
    total_bytes = n * (c_in + c_out) * s * itemsize + w_bytes
    single = (2 * total_bytes <= tile_budget) if use_single_block is None else bool(use_single_block)
    if single:
        out = pl.pallas_call(
            _conv1x1_whole_kernel,
            out_shape=jax.ShapeDtypeStruct((n, c_out, s), x_3d.dtype),
            compiler_params=pltpu.CompilerParams(vmem_limit_bytes=vmem_limit),
        )(x_3d, w_mat, b_col)
        return out.reshape(n, c_out, h, w)

    # ---- Tiled path: lane-dense spatial tiles sized against the VMEM budget.
    # Budget: double-buffered x/out tiles + (conservatively 2x) weight/bias.
    per_lane = 2 * itemsize * (c_in + c_out)
    ts_max = (tile_budget - 2 * w_bytes) // max(per_lane, 1)
    ts = min(int(max_tile_s), int(ts_max), _round_up(s, 128))
    ts = max(128, (ts // 128) * 128)
    num_s = pl.cdiv(s, ts)  # partial last block handled by Pallas masked stores

    def _call(single_buffer_params):
        wk = {"pipeline_mode": pl.Buffered(1)} if single_buffer_params else {}
        grid_spec = pltpu.PrefetchScalarGridSpec(
            num_scalar_prefetch=0,
            # Spatial tiles lead -> clean 2-way megacore split on v7x even at N=1.
            grid=(num_s, n),
            in_specs=[
                pl.BlockSpec((1, c_in, ts), lambda j, b: (b, 0, j)),
                pl.BlockSpec((c_out, c_in), lambda j, b: (0, 0), **wk),
                pl.BlockSpec((c_out, 1), lambda j, b: (0, 0), **wk),
            ],
            out_specs=pl.BlockSpec((1, c_out, ts), lambda j, b: (b, 0, j)),
        )
        return pl.pallas_call(
            _conv1x1_tile_kernel,
            out_shape=jax.ShapeDtypeStruct((n, c_out, s), x_3d.dtype),
            grid_spec=grid_spec,
            compiler_params=pltpu.CompilerParams(
                dimension_semantics=("parallel", "parallel"),
                vmem_limit_bytes=vmem_limit,
            ),
        )(x_3d, w_mat, b_col)

    try:
        out = _call(True)       # single-buffer the VMEM-resident weight/bias
    except Exception:
        out = _call(False)      # fall back to default double-buffering
    return out.reshape(n, c_out, h, w)  # trailing-dim split: free


if __name__ == "__main__":
    key = jax.random.PRNGKey(0)
    k_x, k_w, k_b = jax.random.split(key, 3)

    # Small shapes consistent with FPNBlock(in_channels=4, out_channels=8).
    N, C_IN, C_OUT, H, W = 2, 4, 8, 16, 16
    x = jax.random.normal(k_x, (N, C_IN, H, W), dtype=jnp.float32)
    weight = jax.random.normal(k_w, (C_OUT, C_IN, 1, 1), dtype=jnp.float32) * 0.1
    bias = jax.random.normal(k_b, (C_OUT,), dtype=jnp.float32) * 0.1

    def ref_conv(xv, wv, bv):
        return (jnp.einsum("nchw,oc->nohw", xv, wv.reshape(C_OUT, C_IN))
                + bv[None, :, None, None])

    # Case 1: tiny problem -> single-invocation whole-in-VMEM path.
    out = jax.block_until_ready(fpn_block_conv1x1(x, weight, bias))
    assert out.shape == (N, C_OUT, H, W)
    assert jnp.allclose(out, ref_conv(x, weight, bias), atol=1e-5, rtol=1e-5)

    # Case 2: non-128-multiple spatial size, forced tiled path -> exercises
    # the (spatial, batch) grid and the masked partial last spatial block.
    H2, W2 = 20, 17  # S = 340
    x2 = jax.random.normal(k_x, (N, C_IN, H2, W2), dtype=jnp.float32)
    out2 = jax.block_until_ready(
        fpn_block_conv1x1(x2, weight, bias, max_tile_s=128, use_single_block=False))
    assert out2.shape == (N, C_OUT, H2, W2)
    assert jnp.allclose(out2, ref_conv(x2, weight, bias), atol=1e-5, rtol=1e-5)

    print("KERNEL_OK")
</pallas_src>

<mosaic_0001>
module attributes {stable_mosaic.version = 11 : i64} {
  func.func @_conv1x1_whole_kernel(%arg0: memref<2x4x256xf32, #tpu.memory_space<vmem>>, %arg1: memref<8x4xf32, #tpu.memory_space<vmem>>, %arg2: memref<8x1xf32, #tpu.memory_space<vmem>>, %arg3: memref<2x8x256xf32, #tpu.memory_space<vmem>>) attributes {dimension_semantics = [], scalar_prefetch = 0 : i64, scratch_operands = 0 : i64, tpu.core_type = #tpu.core_type<tc>} {
    %c0 = arith.constant 0 : index
    %c0_0 = arith.constant 0 : index
    %0 = vector.load %arg1[%c0, %c0_0] : memref<8x4xf32, #tpu.memory_space<vmem>>, vector<8x4xf32>
    %c0_1 = arith.constant 0 : index
    %c0_2 = arith.constant 0 : index
    %c0_3 = arith.constant 0 : index
    %1 = vector.load %arg0[%c0_1, %c0_2, %c0_3] : memref<2x4x256xf32, #tpu.memory_space<vmem>>, vector<1x4x256xf32>
    %2 = vector.shape_cast %1 : vector<1x4x256xf32> to vector<4x256xf32>
    %cst = arith.constant dense<0.000000e+00> : vector<8x256xf32>
    %3 = tpu.matmul %0, %2, %cst {dimension_numbers = #tpu.dot_dimension_numbers<[1], [0], [0], [1], [0, 0, 1, 1], [], []>} : vector<8x4xf32>, vector<4x256xf32>, vector<8x256xf32> -> vector<8x256xf32>
    %c0_4 = arith.constant 0 : index
    %c0_5 = arith.constant 0 : index
    %4 = vector.load %arg2[%c0_4, %c0_5] : memref<8x1xf32, #tpu.memory_space<vmem>>, vector<8x1xf32>
    %5 = vector.broadcast %4 : vector<8x1xf32> to vector<8x256xf32>
    %6 = arith.addf %3, %5 : vector<8x256xf32>
    %c0_6 = arith.constant 0 : index
    %c0_7 = arith.constant 0 : index
    %c0_8 = arith.constant 0 : index
    %7 = vector.load %arg3[%c0_6, %c0_7, %c0_8] : memref<2x8x256xf32, #tpu.memory_space<vmem>>, vector<1x8x256xf32>
    %8 = vector.shape_cast %7 : vector<1x8x256xf32> to vector<8x256xf32>
    %9 = vector.shape_cast %6 : vector<8x256xf32> to vector<1x8x256xf32>
    tpu.vector_store %arg3[%c0_6, %c0_7, %c0_8], %9 {strides = array<i32>} : memref<2x8x256xf32, #tpu.memory_space<vmem>>, vector<1x8x256xf32>,
    %c0_9 = arith.constant 0 : index
    %c0_10 = arith.constant 0 : index
    %10 = vector.load %arg1[%c0_9, %c0_10] : memref<8x4xf32, #tpu.memory_space<vmem>>, vector<8x4xf32>
    %c1 = arith.constant 1 : index
    %c0_11 = arith.constant 0 : index
    %c0_12 = arith.constant 0 : index
    %11 = vector.load %arg0[%c1, %c0_11, %c0_12] : memref<2x4x256xf32, #tpu.memory_space<vmem>>, vector<1x4x256xf32>
    %12 = vector.shape_cast %11 : vector<1x4x256xf32> to vector<4x256xf32>
    %cst_13 = arith.constant dense<0.000000e+00> : vector<8x256xf32>
    %13 = tpu.matmul %10, %12, %cst_13 {dimension_numbers = #tpu.dot_dimension_numbers<[1], [0], [0], [1], [0, 0, 1, 1], [], []>} : vector<8x4xf32>, vector<4x256xf32>, vector<8x256xf32> -> vector<8x256xf32>
    %c0_14 = arith.constant 0 : index
    %c0_15 = arith.constant 0 : index
    %14 = vector.load %arg2[%c0_14, %c0_15] : memref<8x1xf32, #tpu.memory_space<vmem>>, vector<8x1xf32>
    %15 = vector.broadcast %14 : vector<8x1xf32> to vector<8x256xf32>
    %16 = arith.addf %13, %15 : vector<8x256xf32>
    %c1_16 = arith.constant 1 : index
    %c0_17 = arith.constant 0 : index
    %c0_18 = arith.constant 0 : index
    %17 = vector.load %arg3[%c1_16, %c0_17, %c0_18] : memref<2x8x256xf32, #tpu.memory_space<vmem>>, vector<1x8x256xf32>
    %18 = vector.shape_cast %17 : vector<1x8x256xf32> to vector<8x256xf32>
    %19 = vector.shape_cast %16 : vector<8x256xf32> to vector<1x8x256xf32>
    tpu.vector_store %arg3[%c1_16, %c0_17, %c0_18], %19 {strides = array<i32>} : memref<2x8x256xf32, #tpu.memory_space<vmem>>, vector<1x8x256xf32>,
    return
  }
}

</mosaic_0001>

<llo_original>
// kernel: tpu_custom_call.1
$region0: #{tpu_custom_call.1}
  #allocation0 [shape = 'u32[]', space=smem, size = 0x4, offset = 0x4, fixed_abs, tag = 'smem constant byte address 0x4 - core index']
  #allocation1 [shape = 'u32[72,128]{1,0:T(1,128)}', space=vmem, size = 0x9000, scoped, tag = 'internal scratch']
  %s0 = inlined_call_operand.vmem [shape: f32[2,4,256], index: 0, kind: input, shape index: {}]
  %s1 = inlined_call_operand.vmem [shape: f32[8,4], index: 1, kind: input, shape index: {}]
  %s2 = inlined_call_operand.vmem [shape: f32[8,1], index: 2, kind: input, shape index: {}]
  %s3 = inlined_call_operand.hbm [shape: f32[2,8,256], index: 3, kind: output, shape index: {}]
  %s4 = sld [smem:[#allocation0]]
  $region22: #{tpu_custom_call.1} parent=0
    _
  %s6 = ssub.s32 1, %s4
  %s7 = scalar_select 0, %s6, %s4
  $region1: #{tpu_custom_call.1} parent=0
    #allocation2 [shape = 'u8[16384]{0}', space=vmem, size = 0x4000, scoped, tag = 'output window, operand 0, single buffered']
    #allocation3 [shape = 's32[1]{0}', space=sflag, size = 0x4, scoped, tag = 'scoped memory for tpu_custom_call.1']
    %8 = vsyncpa [#allocation3], 0
    // Predicated region
    $region2: #{tpu_custom_call.1} parent=1 // pred_check
      _
    $region3: #{tpu_custom_call.1} parent=1 // pred_check_branch
      %10 = sbr.rel (0) target = $region5
    $region4: #{tpu_custom_call.1} parent=1 // pred_region
      _
    $region5: #{tpu_custom_call.1} parent=1 // pred_fallthru
      _
    // Predicated region
    $region6: #{tpu_custom_call.1} parent=1 // pred_check
      _
    $region7: #{tpu_custom_call.1} parent=1 // pred_check_branch
      %12 = sbr.rel (0) target = $region9
    $region8: #{tpu_custom_call.1} parent=1 // pred_region
      _
    $region9: #{tpu_custom_call.1} parent=1 // pred_fallthru
      _
    // Predicated region
    $region10: #{tpu_custom_call.1} parent=1 // pred_check
      _
    $region11: #{tpu_custom_call.1} parent=1 // pred_check_branch
      %14 = sbr.rel (0) target = $region13
    $region12: #{tpu_custom_call.1} parent=1 // pred_region
      _
    $region13: #{tpu_custom_call.1} parent=1 // pred_fallthru
      _
    %v15 = vld [vmem:[%s1] sm:$0xff]
    %v16 = vld [vmem:[%s0] sm:$0xff]
    %v17 = vld [vmem:[%s2] sm:$0xff]
    %19 = vset.pattern.permute.xlu0 0
    %20 = vperm.xlu0 %19, %v17
    %v21 = vpop.permute.xlu0 %20
    %24 = vst [vmem:[#allocation1] ss:$2 sm:$0xff] %v16
    %v25 = vld.sshfl [vmem:[#allocation1] sm:$0xff pattern:$0x75316420]
    %v26 = vld.sshfl [vmem:[#allocation1 + $0x8] sm:$0xff pattern:$0x75316420]
    %vm27 = vcmask 31744
    %v29 = vsel %vm27, %v15, 0
    %vm31 = vcmask 1043456
    %v32 = vsel %vm31, %v25, 0
    %v34 = vsel %vm31, %v26, 0
    %36 = vmatpush.msra.mxu0 0.0
    %37 = vmatpush.msra.mxu0 0.0
    %38 = vmatpush.msra.mxu0 0.0
    %39 = vmatpush.msra.mxu0 0.0
    %40 = vmatpush.msra.mxu0 0.0
    %41 = vmatpush.msra.mxu0 0.0
    %42 = vmatpush.msra.mxu0 0.0
    %43 = vmatpush.msra.mxu0 0.0
    %44 = vmatpush.msra.mxu0 0.0
    %45 = vmatpush.msra.mxu0 0.0
    %46 = vmatpush.msra.mxu0 0.0
    %47 = vmatpush.msra.mxu0 0.0
    %48 = vmatpush.msra.mxu0 0.0
    %49 = vmatpush.msra.mxu0 0.0
    %50 = vmatpush.msra.mxu0 0.0
    %51 = vmatpush.msra.mxu0 %v32
    %52 = vmatmul.f32.gmra.mxu0 %v29
    %v53 = vpop.f32.mrf.mxu0
    %v54 = vadd.f32 %v21, %v53
    %55 = vdwg.mxu0
    %56 = vmatpush.msra.mxu0 0.0
    %57 = vmatpush.msra.mxu0 0.0
    %58 = vmatpush.msra.mxu0 0.0
    %59 = vmatpush.msra.mxu0 0.0
    %60 = vmatpush.msra.mxu0 0.0
    %61 = vmatpush.msra.mxu0 0.0
    %62 = vmatpush.msra.mxu0 0.0
    %63 = vmatpush.msra.mxu0 0.0
    %64 = vmatpush.msra.mxu0 0.0
    %65 = vmatpush.msra.mxu0 0.0
    %66 = vmatpush.msra.mxu0 0.0
    %67 = vmatpush.msra.mxu0 0.0
    %68 = vmatpush.msra.mxu0 0.0
    %69 = vmatpush.msra.mxu0 0.0
    %70 = vmatpush.msra.mxu0 0.0
    %71 = vmatpush.msra.mxu0 %v34
    %72 = vmatmul.f32.gmra.mxu0 %v29
    %v73 = vpop.f32.mrf.mxu0
    %v74 = vadd.f32 %v21, %v73
    %75 = vdwg.mxu0
    %76 = vst [vmem:[#allocation2] sm:$0xff] %v54
    %77 = vst [vmem:[#allocation2 + $0x8] sm:$0xff] %v74
    %v78 = vld [vmem:[%s1] sm:$0xff]
    %s79 = scalar_lea.vmem %s0, 8
    %v80 = vld [vmem:[%s79] sm:$0xff]
    %v81 = vld [vmem:[%s2] sm:$0xff]
    %83 = vset.pattern.permute.xlu0 0
    %84 = vperm.xlu0 %83, %v81
    %v85 = vpop.permute.xlu0 %84
    %88 = vst [vmem:[#allocation1] ss:$2 sm:$0xff] %v80
    %v89 = vld.sshfl [vmem:[#allocation1] sm:$0xff pattern:$0x75316420]
    %v90 = vld.sshfl [vmem:[#allocation1 + $0x8] sm:$0xff pattern:$0x75316420]
    %v92 = vsel %vm27, %v78, 0
    %v94 = vsel %vm31, %v89, 0
    %v96 = vsel %vm31, %v90, 0
    %98 = vmatpush.msra.mxu0 0.0
    %99 = vmatpush.msra.mxu0 0.0
    %100 = vmatpush.msra.mxu0 0.0
    %101 = vmatpush.msra.mxu0 0.0
    %102 = vmatpush.msra.mxu0 0.0
    %103 = vmatpush.msra.mxu0 0.0
    %104 = vmatpush.msra.mxu0 0.0
    %105 = vmatpush.msra.mxu0 0.0
    %106 = vmatpush.msra.mxu0 0.0
    %107 = vmatpush.msra.mxu0 0.0
    %108 = vmatpush.msra.mxu0 0.0
    %109 = vmatpush.msra.mxu0 0.0
    %110 = vmatpush.msra.mxu0 0.0
    %111 = vmatpush.msra.mxu0 0.0
    %112 = vmatpush.msra.mxu0 0.0
    %113 = vmatpush.msra.mxu0 %v94
    %114 = vmatmul.f32.gmra.mxu0 %v92
    %v115 = vpop.f32.mrf.mxu0
    %v116 = vadd.f32 %v85, %v115
    %117 = vdwg.mxu0
    %118 = vmatpush.msra.mxu0 0.0
    %119 = vmatpush.msra.mxu0 0.0
    %120 = vmatpush.msra.mxu0 0.0
    %121 = vmatpush.msra.mxu0 0.0
    %122 = vmatpush.msra.mxu0 0.0
    %123 = vmatpush.msra.mxu0 0.0
    %124 = vmatpush.msra.mxu0 0.0
    %125 = vmatpush.msra.mxu0 0.0
    %126 = vmatpush.msra.mxu0 0.0
    %127 = vmatpush.msra.mxu0 0.0
    %128 = vmatpush.msra.mxu0 0.0
    %129 = vmatpush.msra.mxu0 0.0
    %130 = vmatpush.msra.mxu0 0.0
    %131 = vmatpush.msra.mxu0 0.0
    %132 = vmatpush.msra.mxu0 0.0
    %133 = vmatpush.msra.mxu0 %v96
    %134 = vmatmul.f32.gmra.mxu0 %v92
    %v135 = vpop.f32.mrf.mxu0
    %v136 = vadd.f32 %v85, %v135
    %137 = vdwg.mxu0
    %s138 = scalar_lea.vmem [#allocation2], 16
    %139 = vst [vmem:[%s138] sm:$0xff] %v116
    %140 = vst [vmem:[%s138 + $0x8] sm:$0xff] %v136
    // Predicated region
    $region14: #{tpu_custom_call.1} parent=1 // pred_check
      _
    $region15: #{tpu_custom_call.1} parent=1 // pred_check_branch
      %142 = sbr.rel (0) target = $region17
    $region16: #{tpu_custom_call.1} parent=1 // pred_region
      %144 = vsyncadd [#allocation3], 0
      %s145 = sshll.u32 [#allocation2], 4
      %s146 = int_to_ptr.vmem [resolvable:$true] %s145
      %s147 = sshll.u32 %s3, 4
      %s148 = int_to_ptr.hbm [resolvable:$true] %s147
      %153 = dma.vmem_to_hbm [thread:$0]  %s146, 512, %s148, [#allocation3], 256, 256, 16
    $region17: #{tpu_custom_call.1} parent=1 // pred_fallthru
      _
    // Predicated region
    $region18: #{tpu_custom_call.1} parent=1 // pred_check
      _
    $region19: #{tpu_custom_call.1} parent=1 // pred_check_branch
      %155 = sbr.rel (0) target = $region21
    $region20: #{tpu_custom_call.1} parent=1 // pred_region
      %157 = dma.done [#allocation3], 512
    $region21: #{tpu_custom_call.1} parent=1 // pred_fallthru
      _
    %158 = vsyncpa [#allocation3], 1

</llo_original>
